<compile_context>
chip_gen: v7x
topology: tpu7x:2x2x1
jax: 0.10.0
libtpu: 0.0.40
codegen_flags: <defaults>
</compile_context>

<pallas_src>
import functools

import jax
import jax.numpy as jnp
from jax import lax
from jax.experimental import pallas as pl
from jax.experimental.pallas import tpu as pltpu
import numpy as np

# ----------------------------- config ---------------------------------------
INPUT_SIZE = 16
OUTPUT_SIZE = 8
HIDDEN_SIZE = 32
ETA = 0.5

SEQ_LEN = 64                     # independent forward steps per call
PACK_W = 128                     # lane-dense packed output width
YHAT_LANE = OUTPUT_SIZE + HIDDEN_SIZE   # lane holding argmax (stored as f32)
AUG = INPUT_SIZE + 2             # x | sum(y_kt) | 1


def _round_up(n, m):
    return ((n + m - 1) // m) * m


# ----------------------------- kernel ---------------------------------------
def skipe_rnn_kernel(xa_ref, ua_ref, wpack_ref, bpack_ref, out_ref):
    # d = up / down computed directly through pre-scaled augmented weights:
    #   xa = [x | sum(y_kt) | 1]
    #   ua = [[-O * inv_down * U_w^T], [inv_down], [-O * inv_down * U_b]]
    d = jnp.dot(xa_ref[...], ua_ref[...],
                preferred_element_type=jnp.float32)          # (TB, HIDDEN)

    max_abs_d = jnp.max(jnp.abs(d), axis=-1, keepdims=True)  # (TB, 1)
    # NOTE: like the PyTorch module, max|d| == 0 would give NaN; not guarded.
    h = jnp.exp(d * (jnp.float32(-ETA) / max_abs_d))          # (TB, HIDDEN)

    # One matmul emits the lane-dense packed block directly:
    #   lanes [0, 8)   = o = h @ V^T + V_b
    #   lanes [8, 40)  = h          (identity columns of wpack)
    #   lanes [40,128) = 0
    packed = jnp.dot(h, wpack_ref[...],
                     preferred_element_type=jnp.float32) + bpack_ref[...]

    # y_hat = argmax(o, axis=-1), first occurrence (torch semantics)
    o = packed[:, :OUTPUT_SIZE]                               # (TB, OUTPUT)
    o_max = jnp.max(o, axis=-1, keepdims=True)
    idx = lax.broadcasted_iota(jnp.int32, o.shape, 1)
    y_hat = jnp.min(jnp.where(o == o_max, idx, jnp.int32(OUTPUT_SIZE)),
                    axis=-1, keepdims=True).astype(jnp.float32)   # (TB, 1)

    # splice y_hat into lane YHAT_LANE and do ONE full-width unmasked store
    lane = lax.broadcasted_iota(jnp.int32, packed.shape, 1)
    out_ref[...] = jnp.where(lane == YHAT_LANE, y_hat, packed)


# ----------------------------- wrapper ---------------------------------------
@jax.jit
def skipe_rnn_forward(x_seq, y_kt_seq, u_w, u_b, v_w, v_b):
    """SkipERNN forward (hyperplane path) over T independent steps.

    x_seq:    (T, INPUT_SIZE)   each row is one module call's x (1, input_size)
    y_kt_seq: (T, OUTPUT_SIZE)  each row is one module call's y_kt
    Returns (y_hat (T,) int32, o (T, OUTPUT_SIZE), h (T, HIDDEN_SIZE)).
    """
    t = x_seq.shape[0]

    # ---- hoisted, weight-only prep (cheap XLA ops, once per call) ----------
    u_b2 = u_b.reshape(1, HIDDEN_SIZE)
    inv_down = 1.0 / jnp.sqrt(1.0 + jnp.sum(u_w * u_w) + u_b2 * u_b2)  # (1,H)
    scale = jnp.float32(-OUTPUT_SIZE) * inv_down                        # (1,H)
    u_aug = jnp.concatenate(
        [u_w.T * scale,          # rows multiplying x
         inv_down,               # row multiplying sum(y_kt)
         u_b2 * scale],          # row multiplying the constant 1 (bias)
        axis=0)                  # (INPUT_SIZE + 2, HIDDEN_SIZE)

    w_pack = jnp.zeros((HIDDEN_SIZE, PACK_W), jnp.float32)
    w_pack = w_pack.at[:, :OUTPUT_SIZE].set(v_w.T)
    w_pack = w_pack.at[:, OUTPUT_SIZE:OUTPUT_SIZE + HIDDEN_SIZE].set(
        jnp.eye(HIDDEN_SIZE, dtype=jnp.float32))
    b_pack = jnp.zeros((1, PACK_W), jnp.float32)
    b_pack = b_pack.at[:, :OUTPUT_SIZE].set(v_b.reshape(1, OUTPUT_SIZE))

    # ---- augment x so sum(y_kt) and the bias ride the single matmul DMA ----
    s = jnp.sum(y_kt_seq, axis=-1, keepdims=True)             # (T, 1)
    ones = jnp.ones((t, 1), jnp.float32)
    x_aug = jnp.concatenate([x_seq, s, ones], axis=-1)        # (T, AUG)

    # ---- tile choice: one grid step for small T; 256-aligned for large T ---
    tb = _round_up(t, 8) if t <= 256 else 256
    t_pad = _round_up(t, tb)
    if t_pad != t:
        # edge-replicate the tail so padded rows stay finite (sliced off later)
        x_aug = jnp.pad(x_aug, ((0, t_pad - t), (0, 0)), mode="edge")

    const = lambda i: (0, 0)    # weights: same block every step (VMEM-resident)
    packed = pl.pallas_call(
        skipe_rnn_kernel,
        out_shape=jax.ShapeDtypeStruct((t_pad, PACK_W), jnp.float32),
        grid=(t_pad // tb,),
        in_specs=[
            pl.BlockSpec((tb, AUG), lambda i: (i, 0)),                 # x_aug
            pl.BlockSpec((AUG, HIDDEN_SIZE), const),                   # u_aug
            pl.BlockSpec((HIDDEN_SIZE, PACK_W), const),                # w_pack
            pl.BlockSpec((1, PACK_W), const),                          # b_pack
        ],
        out_specs=pl.BlockSpec((tb, PACK_W), lambda i: (i, 0)),
        compiler_params=pltpu.CompilerParams(
            dimension_semantics=("parallel",)),
    )(x_aug, u_aug, w_pack, b_pack)

    packed = packed[:t]
    o = packed[:, :OUTPUT_SIZE]
    h = packed[:, OUTPUT_SIZE:OUTPUT_SIZE + HIDDEN_SIZE]
    # NOTE: int32 here (torch argmax returns int64)
    y_hat = packed[:, YHAT_LANE].astype(jnp.int32)
    return y_hat, o, h


# ----------------------------- reference (float64 NumPy) ---------------------
def skipe_rnn_ref(x_seq, y_kt_seq, u_w, u_b, v_w, v_b):
    x = np.asarray(x_seq, np.float64)
    y = np.asarray(y_kt_seq, np.float64)
    uw = np.asarray(u_w, np.float64)
    ub = np.asarray(u_b, np.float64)
    vw = np.asarray(v_w, np.float64)
    vb = np.asarray(v_b, np.float64)

    a = x @ uw.T + ub                                            # (T, HID)
    up = np.sum(y, axis=-1, keepdims=True) - OUTPUT_SIZE * a
    down = np.sqrt(1.0 + np.sum(uw ** 2) + ub ** 2)              # (HID,)
    d = up / down
    h = np.exp(-ETA * d / np.max(np.abs(d), axis=-1, keepdims=True))
    o = h @ vw.T + vb
    y_hat = np.argmax(o, axis=-1)
    return y_hat, o, h


# ----------------------------- main ------------------------------------------
if __name__ == "__main__":
    key = jax.random.PRNGKey(0)
    k_x, k_y, k_uw, k_vw = jax.random.split(key, 4)

    # deterministic parameter init mirroring the module's __init__
    # U: normal(0, 1/sqrt(input_size)) weight, zero bias
    u_w = (jax.random.normal(k_uw, (HIDDEN_SIZE, INPUT_SIZE), jnp.float32)
           / np.float32(np.sqrt(INPUT_SIZE)))
    u_b = jnp.zeros((HIDDEN_SIZE,), jnp.float32)
    # V: xavier_uniform with gain=4.0, zero bias
    bound = 4.0 * float(np.sqrt(6.0 / (HIDDEN_SIZE + OUTPUT_SIZE)))
    v_w = jax.random.uniform(k_vw, (OUTPUT_SIZE, HIDDEN_SIZE), jnp.float32,
                             minval=-bound, maxval=bound)
    v_b = jnp.zeros((OUTPUT_SIZE,), jnp.float32)

    # inputs: SEQ_LEN independent forward steps, one (1, input_size) x and one
    # (1, output_size) y_kt per step, stacked along the leading axis.
    x_seq = jax.random.normal(k_x, (SEQ_LEN, INPUT_SIZE), jnp.float32)
    y_kt_seq = jax.random.normal(k_y, (SEQ_LEN, OUTPUT_SIZE), jnp.float32)

    y_hat, o, h = skipe_rnn_forward(x_seq, y_kt_seq, u_w, u_b, v_w, v_b)
    (y_hat, o, h) = jax.block_until_ready((y_hat, o, h))

    y_hat_r, o_r, h_r = skipe_rnn_ref(x_seq, y_kt_seq, u_w, u_b, v_w, v_b)
    # Tolerance covers f32 rounding and any MXU pass-count difference vs. the
    # float64 reference (the exact-divide kernel is typically ~1e-5 away).
    np.testing.assert_allclose(np.asarray(o), o_r, rtol=1e-2, atol=1e-2)
    np.testing.assert_allclose(np.asarray(h), h_r, rtol=1e-2, atol=1e-2)
    # argmax (first occurrence) must be exactly consistent with the kernel's o
    assert np.array_equal(np.asarray(y_hat),
                          np.argmax(np.asarray(o), axis=-1))
    print("KERNEL_OK")
</pallas_src>

<mosaic_0001>
module attributes {stable_mosaic.version = 11 : i64} {
  func.func @skipe_rnn_kernel(%arg0: i32, %arg1: memref<64x18xf32, #tpu.memory_space<vmem>>, %arg2: memref<18x32xf32, #tpu.memory_space<vmem>>, %arg3: memref<32x128xf32, #tpu.memory_space<vmem>>, %arg4: memref<1x128xf32, #tpu.memory_space<vmem>>, %arg5: memref<64x128xf32, #tpu.memory_space<vmem>>) attributes {dimension_semantics = [#tpu.dimension_semantics<parallel>], iteration_bounds = array<i64: 1>, scalar_prefetch = 0 : i64, scratch_operands = 0 : i64, tpu.core_type = #tpu.core_type<tc>, window_params = [{transform_indices = @transform_0, window_bounds = array<i64: 64, 18>}, {pipeline_mode = #tpu.pipeline_mode<synchronous>, transform_indices = @transform_1, window_bounds = array<i64: 18, 32>}, {pipeline_mode = #tpu.pipeline_mode<synchronous>, transform_indices = @transform_2, window_bounds = array<i64: 32, 128>}, {pipeline_mode = #tpu.pipeline_mode<synchronous>, transform_indices = @transform_3, window_bounds = array<i64: 1, 128>}, {transform_indices = @transform_4, window_bounds = array<i64: 64, 128>}]} {
    %c0 = arith.constant 0 : index
    %c0_0 = arith.constant 0 : index
    %0 = vector.load %arg1[%c0, %c0_0] : memref<64x18xf32, #tpu.memory_space<vmem>>, vector<64x18xf32>
    %c0_1 = arith.constant 0 : index
    %c0_2 = arith.constant 0 : index
    %1 = vector.load %arg2[%c0_1, %c0_2] : memref<18x32xf32, #tpu.memory_space<vmem>>, vector<18x32xf32>
    %cst = arith.constant dense<0.000000e+00> : vector<64x32xf32>
    %2 = tpu.matmul %0, %1, %cst {dimension_numbers = #tpu.dot_dimension_numbers<[1], [0], [0], [1], [0, 0, 1, 1], [], []>} : vector<64x18xf32>, vector<18x32xf32>, vector<64x32xf32> -> vector<64x32xf32>
    %3 = math.absf %2 : vector<64x32xf32>
    %cst_3 = arith.constant dense<0xFF800000> : vector<64xf32>
    %4 = vector.multi_reduction <maximumf>, %3, %cst_3 [1] : vector<64x32xf32> to vector<64xf32>
    %5 = vector.shape_cast %4 : vector<64xf32> to vector<64x1xf32>
    %cst_4 = arith.constant -5.000000e-01 : f32
    %6 = vector.broadcast %cst_4 : f32 to vector<64x1xf32>
    %7 = arith.divf %6, %5 : vector<64x1xf32>
    %8 = vector.broadcast %7 : vector<64x1xf32> to vector<64x32xf32>
    %9 = arith.mulf %2, %8 : vector<64x32xf32>
    %10 = math.exp %9 : vector<64x32xf32>
    %c0_5 = arith.constant 0 : index
    %c0_6 = arith.constant 0 : index
    %11 = vector.load %arg3[%c0_5, %c0_6] : memref<32x128xf32, #tpu.memory_space<vmem>>, vector<32x128xf32>
    %cst_7 = arith.constant dense<0.000000e+00> : vector<64x128xf32>
    %12 = tpu.matmul %10, %11, %cst_7 {dimension_numbers = #tpu.dot_dimension_numbers<[1], [0], [0], [1], [0, 0, 1, 1], [], []>} : vector<64x32xf32>, vector<32x128xf32>, vector<64x128xf32> -> vector<64x128xf32>
    %c0_8 = arith.constant 0 : index
    %c0_9 = arith.constant 0 : index
    %13 = vector.load %arg4[%c0_8, %c0_9] : memref<1x128xf32, #tpu.memory_space<vmem>>, vector<1x128xf32>
    %14 = vector.broadcast %13 : vector<1x128xf32> to vector<64x128xf32>
    %15 = arith.addf %12, %14 : vector<64x128xf32>
    %16 = vector.extract_strided_slice %15 {offsets = [0, 0], sizes = [64, 8], strides = [1, 1]} : vector<64x128xf32> to vector<64x8xf32>
    %cst_10 = arith.constant dense<0xFF800000> : vector<64xf32>
    %17 = vector.multi_reduction <maximumf>, %16, %cst_10 [1] : vector<64x8xf32> to vector<64xf32>
    %18 = vector.shape_cast %17 : vector<64xf32> to vector<64x1xf32>
    %19 = tpu.iota {dimensions = array<i32: 1>} : vector<64x8xi32>
    %20 = vector.broadcast %18 : vector<64x1xf32> to vector<64x8xf32>
    %21 = arith.cmpf oeq, %16, %20 : vector<64x8xf32>
    %c8_i32 = arith.constant 8 : i32
    %22 = vector.broadcast %c8_i32 : i32 to vector<64x8xi32>
    %23 = arith.select %21, %19, %22 : vector<64x8xi1>, vector<64x8xi32>
    %cst_11 = arith.constant dense<2147483647> : vector<64xi32>
    %24 = vector.multi_reduction <minsi>, %23, %cst_11 [1] : vector<64x8xi32> to vector<64xi32>
    %25 = vector.shape_cast %24 : vector<64xi32> to vector<64x1xi32>
    %26 = arith.sitofp %25 : vector<64x1xi32> to vector<64x1xf32>
    %27 = tpu.iota {dimensions = array<i32: 1>} : vector<64x128xi32>
    %c40_i32 = arith.constant 40 : i32
    %28 = vector.broadcast %c40_i32 : i32 to vector<64x128xi32>
    %29 = arith.cmpi eq, %27, %28 : vector<64x128xi32>
    %30 = vector.shape_cast %26 : vector<64x1xf32> to vector<64x1xf32>
    %31 = vector.broadcast %30 : vector<64x1xf32> to vector<64x128xf32>
    %32 = arith.select %29, %31, %15 : vector<64x128xi1>, vector<64x128xf32>
    %c0_12 = arith.constant 0 : index
    %c0_13 = arith.constant 0 : index
    %33 = vector.load %arg5[%c0_12, %c0_13] : memref<64x128xf32, #tpu.memory_space<vmem>>, vector<64x128xf32>
    tpu.vector_store %arg5[%c0_12, %c0_13], %32 {strides = array<i32>} : memref<64x128xf32, #tpu.memory_space<vmem>>, vector<64x128xf32>,
    return
  }
  func.func @transform_0(%arg0: i32) -> (i32, i32) {
    %c0_i32 = arith.constant 0 : i32
    %c0_i32_0 = arith.constant 0 : i32
    return %arg0, %c0_i32 : i32, i32
  }
  func.func @transform_1(%arg0: i32) -> (i32, i32) {
    %c0_i32 = arith.constant 0 : i32
    %c0_i32_0 = arith.constant 0 : i32
    %c0_i32_1 = arith.constant 0 : i32
    return %c0_i32, %c0_i32_0 : i32, i32
  }
  func.func @transform_2(%arg0: i32) -> (i32, i32) {
    %c0_i32 = arith.constant 0 : i32
    %c0_i32_0 = arith.constant 0 : i32
    %c0_i32_1 = arith.constant 0 : i32
    return %c0_i32, %c0_i32_0 : i32, i32
  }
  func.func @transform_3(%arg0: i32) -> (i32, i32) {
    %c0_i32 = arith.constant 0 : i32
    %c0_i32_0 = arith.constant 0 : i32
    %c0_i32_1 = arith.constant 0 : i32
    return %c0_i32, %c0_i32_0 : i32, i32
  }
  func.func @transform_4(%arg0: i32) -> (i32, i32) {
    %c0_i32 = arith.constant 0 : i32
    %c0_i32_0 = arith.constant 0 : i32
    return %arg0, %c0_i32 : i32, i32
  }
}

</mosaic_0001>

<llo_original>
// kernel: skipe_rnn_forward.1
$region0: #{skipe_rnn_forward.1}
  #allocation0 [shape = 'u32[]', space=smem, size = 0x4, offset = 0x4, fixed_abs, tag = 'smem constant byte address 0x4 - core index']
  #allocation1 [shape = 'u32[144,128]{1,0:T(1,128)}', space=vmem, size = 0x12000, scoped, tag = 'internal scratch']
  %s0 = inlined_call_operand.vmem [shape: f32[64,18], index: 0, kind: input, shape index: {}]
  %s1 = inlined_call_operand.vmem [shape: f32[18,32], index: 1, kind: input, shape index: {}]
  %s2 = inlined_call_operand.vmem [shape: f32[32,128], index: 2, kind: input, shape index: {}]
  %s3 = inlined_call_operand.vmem [shape: f32[1,128], index: 3, kind: input, shape index: {}]
  %s4 = inlined_call_operand.vmem [shape: f32[64,128], index: 4, kind: output, shape index: {}]
  %s5 = sld [smem:[#allocation0]]
  $region26: #{skipe_rnn_forward.1} parent=0
    _
  %s7 = ssub.s32 1, %s5
  %s8 = scalar_select 0, %s7, %s5
  // Predicated region
  $region2: #{skipe_rnn_forward.1} parent=0 // pred_check
    _
  $region3: #{skipe_rnn_forward.1} parent=0 // pred_check_branch
    %10 = sbr.rel (0) target = $region5
  $region4: #{skipe_rnn_forward.1} parent=0 // pred_region
    _
  $region5: #{skipe_rnn_forward.1} parent=0 // pred_fallthru
    _
  // Predicated region
  $region6: #{skipe_rnn_forward.1} parent=0 // pred_check
    _
  $region7: #{skipe_rnn_forward.1} parent=0 // pred_check_branch
    %12 = sbr.rel (0) target = $region9
  $region8: #{skipe_rnn_forward.1} parent=0 // pred_region
    _
  $region9: #{skipe_rnn_forward.1} parent=0 // pred_fallthru
    _
  // Predicated region
  $region10: #{skipe_rnn_forward.1} parent=0 // pred_check
    _
  $region11: #{skipe_rnn_forward.1} parent=0 // pred_check_branch
    %14 = sbr.rel (0) target = $region13
  $region12: #{skipe_rnn_forward.1} parent=0 // pred_region
    _
  $region13: #{skipe_rnn_forward.1} parent=0 // pred_fallthru
    _
  // Predicated region
  $region14: #{skipe_rnn_forward.1} parent=0 // pred_check
    _
  $region15: #{skipe_rnn_forward.1} parent=0 // pred_check_branch
    %16 = sbr.rel (0) target = $region17
  $region16: #{skipe_rnn_forward.1} parent=0 // pred_region
    _
  $region17: #{skipe_rnn_forward.1} parent=0 // pred_fallthru
    _
  %v17 = vld [vmem:[%s0] sm:$0xff]
  %v18 = vld [vmem:[%s0 + $0x8] sm:$0xff]
  %v19 = vld [vmem:[%s0 + $0x10] sm:$0xff]
  %v20 = vld [vmem:[%s0 + $0x18] sm:$0xff]
  %v21 = vld [vmem:[%s0 + $0x20] sm:$0xff]
  %v22 = vld [vmem:[%s0 + $0x28] sm:$0xff]
  %v23 = vld [vmem:[%s0 + $0x30] sm:$0xff]
  %v24 = vld [vmem:[%s0 + $0x38] sm:$0xff]
  %v25 = vld [vmem:[%s1] sm:$0xff]
  %v26 = vld [vmem:[%s1 + $0x8] sm:$0xff]
  %v27 = vld [vmem:[%s1 + $0x10] sm:$0x3]
  %vm28 = vcmask 146432
  %v30 = vsel %vm28, %v17, 0
  %v33 = vsel %vm28, %v18, 0
  %v36 = vsel %vm28, %v19, 0
  %v39 = vsel %vm28, %v20, 0
  %v42 = vsel %vm28, %v21, 0
  %v45 = vsel %vm28, %v22, 0
  %v48 = vsel %vm28, %v23, 0
  %v51 = vsel %vm28, %v24, 0
  %vm53 = vcmask 1041408
  %v55 = vsel %vm53, %v27, 0
  %57 = vmatprep.subr.mxu0 0.0
  %58 = vmatpush1.msra.mxu0 %v25
  %59 = vmatprep.subr.mxu0 0.0
  %60 = vmatpush1.msra.mxu0 %v26
  %61 = vmatprep.subr.mxu0 0.0
  %62 = vmatpush1.msra.mxu0 %v55
  %63 = vmatprep.subr.mxu0 0.0
  %64 = vmatpush1.msra.mxu0 0.0
  %65 = vmatprep.subr.mxu0 0.0
  %66 = vmatpush1.msra.mxu0 0.0
  %67 = vmatprep.subr.mxu0 0.0
  %68 = vmatpush1.msra.mxu0 0.0
  %69 = vmatprep.subr.mxu0 0.0
  %70 = vmatpush1.msra.mxu0 0.0
  %71 = vmatprep.subr.mxu0 0.0
  %72 = vmatpush1.msra.mxu0 0.0
  %73 = vmatprep.subr.mxu0 0.0
  %74 = vmatpush1.msra.mxu0 0.0
  %75 = vmatprep.subr.mxu0 0.0
  %76 = vmatpush1.msra.mxu0 0.0
  %77 = vmatprep.subr.mxu0 0.0
  %78 = vmatpush1.msra.mxu0 0.0
  %79 = vmatprep.subr.mxu0 0.0
  %80 = vmatpush1.msra.mxu0 0.0
  %81 = vmatprep.subr.mxu0 0.0
  %82 = vmatpush1.msra.mxu0 0.0
  %83 = vmatprep.subr.mxu0 0.0
  %84 = vmatpush1.msra.mxu0 0.0
  %85 = vmatprep.subr.mxu0 0.0
  %86 = vmatpush1.msra.mxu0 0.0
  %87 = vmatprep.subr.mxu0 0.0
  %88 = vmatpush1.msra.mxu0 0.0
  %89 = vmatprep.subr.mxu0 0.0
  %90 = vmatpush1.msra.mxu0 0.0
  %91 = vmatprep.subr.mxu0 0.0
  %92 = vmatpush1.msra.mxu0 0.0
  %93 = vmatprep.subr.mxu0 0.0
  %94 = vmatpush1.msra.mxu0 0.0
  %95 = vmatprep.subr.mxu0 0.0
  %96 = vmatpush1.msra.mxu0 0.0
  %97 = vmatprep.subr.mxu0 0.0
  %98 = vmatpush1.msra.mxu0 0.0
  %99 = vmatprep.subr.mxu0 0.0
  %100 = vmatpush1.msra.mxu0 0.0
  %101 = vmatprep.subr.mxu0 0.0
  %102 = vmatpush1.msra.mxu0 0.0
  %103 = vmatprep.subr.mxu0 0.0
  %104 = vmatpush1.msra.mxu0 0.0
  %105 = vmatprep.subr.mxu0 0.0
  %106 = vmatpush1.msra.mxu0 0.0
  %107 = vmatprep.subr.mxu0 0.0
  %108 = vmatpush1.msra.mxu0 0.0
  %109 = vmatprep.subr.mxu0 0.0
  %110 = vmatpush1.msra.mxu0 0.0
  %111 = vmatprep.subr.mxu0 0.0
  %112 = vmatpush1.msra.mxu0 0.0
  %113 = vmatprep.subr.mxu0 0.0
  %114 = vmatpush1.msra.mxu0 0.0
  %115 = vmatprep.subr.mxu0 0.0
  %116 = vmatpush1.msra.mxu0 0.0
  %117 = vmatprep.subr.mxu0 0.0
  %118 = vmatpush1.msra.mxu0 0.0
  %119 = vmatprep.subr.mxu0 0.0
  %120 = vmatpush1.msra.mxu0 0.0
  %121 = vmatprep.mubr.f32.mxu0 0.0
  %122 = vmatmul.mubr.f32.gmra.mrb[0].mxu0 %v30
  %v123 = vpop.f32.mrb[0].mxu0
  %v124 = vadd.f32 0.0, %v123
  %v125 = vpop.f32.mrb[0].mxu0
  %126 = vmatprep.mubr.f32.mxu0 0.0
  %127 = vmatmul.mubr.f32.gmra.mrb[0].mxu0 %v33
  %v128 = vpop.f32.mrb[0].mxu0
  %v129 = vadd.f32 0.0, %v128
  %v130 = vpop.f32.mrb[0].mxu0
  %131 = vmatprep.mubr.f32.mxu0 0.0
  %132 = vmatmul.mubr.f32.gmra.mrb[0].mxu0 %v36
  %v133 = vpop.f32.mrb[0].mxu0
  %v134 = vadd.f32 0.0, %v133
  %v135 = vpop.f32.mrb[0].mxu0
  %136 = vmatprep.mubr.f32.mxu0 0.0
  %137 = vmatmul.mubr.f32.gmra.mrb[0].mxu0 %v39
  %v138 = vpop.f32.mrb[0].mxu0
  %v139 = vadd.f32 0.0, %v138
  %v140 = vpop.f32.mrb[0].mxu0
  %141 = vmatprep.mubr.f32.mxu0 0.0
  %142 = vmatmul.mubr.f32.gmra.mrb[0].mxu0 %v42
  %v143 = vpop.f32.mrb[0].mxu0
  %v144 = vadd.f32 0.0, %v143
  %v145 = vpop.f32.mrb[0].mxu0
  %146 = vmatprep.mubr.f32.mxu0 0.0
  %147 = vmatmul.mubr.f32.gmra.mrb[0].mxu0 %v45
  %v148 = vpop.f32.mrb[0].mxu0
  %v149 = vadd.f32 0.0, %v148
  %v150 = vpop.f32.mrb[0].mxu0
  %151 = vmatprep.mubr.f32.mxu0 0.0
  %152 = vmatmul.mubr.f32.gmra.mrb[0].mxu0 %v48
  %v153 = vpop.f32.mrb[0].mxu0
  %v154 = vadd.f32 0.0, %v153
  %v155 = vpop.f32.mrb[0].mxu0
  %156 = vmatprep.mubr.f32.mxu0 0.0
  %157 = vmatmul.mubr.f32.gmra.mrb[0].mxu0 %v51
  %v158 = vpop.f32.mrb[0].mxu0
  %v159 = vadd.f32 0.0, %v158
  %v160 = vpop.f32.mrb[0].mxu0
  %161 = vdwg.mxu0
  %v162 = vand.u32 2147483647, %v124
  %v163 = vand.u32 2147483647, %v129
  %v164 = vand.u32 2147483647, %v134
  %v165 = vand.u32 2147483647, %v139
  %v166 = vand.u32 2147483647, %v144
  %v167 = vand.u32 2147483647, %v149
  %v168 = vand.u32 2147483647, %v154
  %v169 = vand.u32 2147483647, %v159
  %vm170 = vcmask 261120
  %v171 = vsel %vm170, %v162, -inf
  %172 = vmax.xlane.f32.xlu0 %v171
  %v173 = vpop.xlane.xlu0 %172
  %v174 = vsel %vm170, %v163, -inf
  %175 = vmax.xlane.f32.xlu0 %v174
  %v176 = vpop.xlane.xlu0 %175
  %v177 = vsel %vm170, %v164, -inf
  %178 = vmax.xlane.f32.xlu0 %v177
  %v179 = vpop.xlane.xlu0 %178
  %v180 = vsel %vm170, %v165, -inf
  %181 = vmax.xlane.f32.xlu0 %v180
  %v182 = vpop.xlane.xlu0 %181
  %v183 = vsel %vm170, %v166, -inf
  %184 = vmax.xlane.f32.xlu0 %v183
  %v185 = vpop.xlane.xlu0 %184
  %v186 = vsel %vm170, %v167, -inf
  %187 = vmax.xlane.f32.xlu0 %v186
  %v188 = vpop.xlane.xlu0 %187
  %v189 = vsel %vm170, %v168, -inf
  %190 = vmax.xlane.f32.xlu0 %v189
  %v191 = vpop.xlane.xlu0 %190
  %v192 = vsel %vm170, %v169, -inf
  %193 = vmax.xlane.f32.xlu0 %v192
  %v194 = vpop.xlane.xlu0 %193
  %v195 = vrcp.pop %v173
  %v196 = vmul.f32 -0.5, %v195
  %v197 = vrcp.pop %v176
  %v198 = vmul.f32 -0.5, %v197
  %v199 = vrcp.pop %v179
  %v200 = vmul.f32 -0.5, %v199
  %v201 = vrcp.pop %v182
  %v202 = vmul.f32 -0.5, %v201
  %v203 = vrcp.pop %v185
  %v204 = vmul.f32 -0.5, %v203
  %v205 = vrcp.pop %v188
  %v206 = vmul.f32 -0.5, %v205
  %v207 = vrcp.pop %v191
  %v208 = vmul.f32 -0.5, %v207
  %v209 = vrcp.pop %v194
  %v210 = vmul.f32 -0.5, %v209
  %v211 = vmul.f32 %v124, %v196
  %v212 = vmul.f32 %v129, %v198
  %v213 = vmul.f32 %v134, %v200
  %v214 = vmul.f32 %v139, %v202
  %v215 = vmul.f32 %v144, %v204
  %v216 = vmul.f32 %v149, %v206
  %v217 = vmul.f32 %v154, %v208
  %v218 = vmul.f32 %v159, %v210
  %v219 = vmul.f32 %v211, 1.442695
  %v220 = vpow.pop %v219
  %v221 = vmul.f32 %v212, 1.442695
  %v222 = vpow.pop %v221
  %v223 = vmul.f32 %v213, 1.442695
  %v224 = vpow.pop %v223
  %v225 = vmul.f32 %v214, 1.442695
  %v226 = vpow.pop %v225
  %v227 = vmul.f32 %v215, 1.442695
  %v228 = vpow.pop %v227
  %v229 = vmul.f32 %v216, 1.442695
  %v230 = vpow.pop %v229
  %v231 = vmul.f32 %v217, 1.442695
  %v232 = vpow.pop %v231
  %v233 = vmul.f32 %v218, 1.442695
  %v234 = vpow.pop %v233
  %v235 = vld [vmem:[%s2] sm:$0xff]
  %v236 = vld [vmem:[%s2 + $0x8] sm:$0xff]
  %v237 = vld [vmem:[%s2 + $0x10] sm:$0xff]
  %v238 = vld [vmem:[%s2 + $0x18] sm:$0xff]
  %v239 = vld [vmem:[%s3] sm:$0x1]
  %v241 = vlaneseq
  %v242 = vshrl.u32 %v241, 7
  %v243 = vsub.s32 0, %v242
  %v244 = vrot.slane %v239, %v243
  %v247 = vsel %vm170, %v220, 0
  %v250 = vsel %vm170, %v222, 0
  %v253 = vsel %vm170, %v224, 0
  %v256 = vsel %vm170, %v226, 0
  %v259 = vsel %vm170, %v228, 0
  %v262 = vsel %vm170, %v230, 0
  %v265 = vsel %vm170, %v232, 0
  %v268 = vsel %vm170, %v234, 0
  %270 = vmatprep.subr.mxu0 0.0
  %271 = vmatpush1.msra.mxu0 %v235
  %272 = vmatprep.subr.mxu0 0.0
  %273 = vmatpush1.msra.mxu0 %v236
  %274 = vmatprep.subr.mxu0 0.0
  %275 = vmatpush1.msra.mxu0 %v237
  %276 = vmatprep.subr.mxu0 0.0
  %277 = vmatpush1.msra.mxu0 %v238
  %278 = vmatprep.subr.mxu0 0.0
  %279 = vmatpush1.msra.mxu0 0.0
  %280 = vmatprep.subr.mxu0 0.0
  %281 = vmatpush1.msra.mxu0 0.0
  %282 = vmatprep.subr.mxu0 0.0
  %283 = vmatpush1.msra.mxu0 0.0
  %284 = vmatprep.subr.mxu0 0.0
  %285 = vmatpush1.msra.mxu0 0.0
  %286 = vmatprep.subr.mxu0 0.0
  %287 = vmatpush1.msra.mxu0 0.0
  %288 = vmatprep.subr.mxu0 0.0
  %289 = vmatpush1.msra.mxu0 0.0
  %290 = vmatprep.subr.mxu0 0.0
  %291 = vmatpush1.msra.mxu0 0.0
  %292 = vmatprep.subr.mxu0 0.0
  %293 = vmatpush1.msra.mxu0 0.0
  %294 = vmatprep.subr.mxu0 0.0
  %295 = vmatpush1.msra.mxu0 0.0
  %296 = vmatprep.subr.mxu0 0.0
  %297 = vmatpush1.msra.mxu0 0.0
  %298 = vmatprep.subr.mxu0 0.0
  %299 = vmatpush1.msra.mxu0 0.0
  %300 = vmatprep.subr.mxu0 0.0
  %301 = vmatpush1.msra.mxu0 0.0
  %302 = vmatprep.subr.mxu0 0.0
  %303 = vmatpush1.msra.mxu0 0.0
  %304 = vmatprep.subr.mxu0 0.0
  %305 = vmatpush1.msra.mxu0 0.0
  %306 = vmatprep.subr.mxu0 0.0
  %307 = vmatpush1.msra.mxu0 0.0
  %308 = vmatprep.subr.mxu0 0.0
  %309 = vmatpush1.msra.mxu0 0.0
  %310 = vmatprep.subr.mxu0 0.0
  %311 = vmatpush1.msra.mxu0 0.0
  %312 = vmatprep.subr.mxu0 0.0
  %313 = vmatpush1.msra.mxu0 0.0
  %314 = vmatprep.subr.mxu0 0.0
  %315 = vmatpush1.msra.mxu0 0.0
  %316 = vmatprep.subr.mxu0 0.0
  %317 = vmatpush1.msra.mxu0 0.0
  %318 = vmatprep.subr.mxu0 0.0
  %319 = vmatpush1.msra.mxu0 0.0
  %320 = vmatprep.subr.mxu0 0.0
  %321 = vmatpush1.msra.mxu0 0.0
  %322 = vmatprep.subr.mxu0 0.0
  %323 = vmatpush1.msra.mxu0 0.0
  %324 = vmatprep.subr.mxu0 0.0
  %325 = vmatpush1.msra.mxu0 0.0
  %326 = vmatprep.subr.mxu0 0.0
  %327 = vmatpush1.msra.mxu0 0.0
  %328 = vmatprep.subr.mxu0 0.0
  %329 = vmatpush1.msra.mxu0 0.0
  %330 = vmatprep.subr.mxu0 0.0
  %331 = vmatpush1.msra.mxu0 0.0
  %332 = vmatprep.subr.mxu0 0.0
  %333 = vmatpush1.msra.mxu0 0.0
  %334 = vmatprep.mubr.f32.mxu0 0.0
  %335 = vmatmul.mubr.f32.gmra.mrb[0].mxu0 %v247
  %v336 = vpop.f32.mrb[0].mxu0
  %v337 = vadd.f32 %v244, %v336
  %v338 = vpop.f32.mrb[0].mxu0
  %339 = vmatprep.mubr.f32.mxu0 0.0
  %340 = vmatmul.mubr.f32.gmra.mrb[0].mxu0 %v250
  %v341 = vpop.f32.mrb[0].mxu0
  %v342 = vadd.f32 %v244, %v341
  %v343 = vpop.f32.mrb[0].mxu0
  %344 = vmatprep.mubr.f32.mxu0 0.0
  %345 = vmatmul.mubr.f32.gmra.mrb[0].mxu0 %v253
  %v346 = vpop.f32.mrb[0].mxu0
  %v347 = vadd.f32 %v244, %v346
  %v348 = vpop.f32.mrb[0].mxu0
  %349 = vmatprep.mubr.f32.mxu0 0.0
  %350 = vmatmul.mubr.f32.gmra.mrb[0].mxu0 %v256
  %v351 = vpop.f32.mrb[0].mxu0
  %v352 = vadd.f32 %v244, %v351
  %v353 = vpop.f32.mrb[0].mxu0
  %354 = vmatprep.mubr.f32.mxu0 0.0
  %355 = vmatmul.mubr.f32.gmra.mrb[0].mxu0 %v259
  %v356 = vpop.f32.mrb[0].mxu0
  %v357 = vadd.f32 %v244, %v356
  %v358 = vpop.f32.mrb[0].mxu0
  %359 = vmatprep.mubr.f32.mxu0 0.0
  %360 = vmatmul.mubr.f32.gmra.mrb[0].mxu0 %v262
  %v361 = vpop.f32.mrb[0].mxu0
  %v362 = vadd.f32 %v244, %v361
  %v363 = vpop.f32.mrb[0].mxu0
  %364 = vmatprep.mubr.f32.mxu0 0.0
  %365 = vmatmul.mubr.f32.gmra.mrb[0].mxu0 %v265
  %v366 = vpop.f32.mrb[0].mxu0
  %v367 = vadd.f32 %v244, %v366
  %v368 = vpop.f32.mrb[0].mxu0
  %369 = vmatprep.mubr.f32.mxu0 0.0
  %370 = vmatmul.mubr.f32.gmra.mrb[0].mxu0 %v268
  %v371 = vpop.f32.mrb[0].mxu0
  %v372 = vadd.f32 %v244, %v371
  %v373 = vpop.f32.mrb[0].mxu0
  %374 = vdwg.mxu0
  %vm375 = vcmask 64512
  %v376 = vsel %vm375, %v337, -inf
  %377 = vmax.xlane.f32.xlu0 %v376
  %v378 = vpop.xlane.xlu0 %377
  %v379 = vsel %vm375, %v342, -inf
  %380 = vmax.xlane.f32.xlu0 %v379
  %v381 = vpop.xlane.xlu0 %380
  %v382 = vsel %vm375, %v347, -inf
  %383 = vmax.xlane.f32.xlu0 %v382
  %v384 = vpop.xlane.xlu0 %383
  %v385 = vsel %vm375, %v352, -inf
  %386 = vmax.xlane.f32.xlu0 %v385
  %v387 = vpop.xlane.xlu0 %386
  %v388 = vsel %vm375, %v357, -inf
  %389 = vmax.xlane.f32.xlu0 %v388
  %v390 = vpop.xlane.xlu0 %389
  %v391 = vsel %vm375, %v362, -inf
  %392 = vmax.xlane.f32.xlu0 %v391
  %v393 = vpop.xlane.xlu0 %392
  %v394 = vsel %vm375, %v367, -inf
  %395 = vmax.xlane.f32.xlu0 %v394
  %v396 = vpop.xlane.xlu0 %395
  %v397 = vsel %vm375, %v372, -inf
  %398 = vmax.xlane.f32.xlu0 %v397
  %v399 = vpop.xlane.xlu0 %398
  %v400 = vlaneseq
  %v401 = vand.u32 %v400, 127
  %vm402 = vcmp.eq.f32.partialorder %v337, %v378
  %vm403 = vcmp.eq.f32.partialorder %v342, %v381
  %vm404 = vcmp.eq.f32.partialorder %v347, %v384
  %vm405 = vcmp.eq.f32.partialorder %v352, %v387
  %vm406 = vcmp.eq.f32.partialorder %v357, %v390
  %vm407 = vcmp.eq.f32.partialorder %v362, %v393
  %vm408 = vcmp.eq.f32.partialorder %v367, %v396
  %vm409 = vcmp.eq.f32.partialorder %v372, %v399
  %v410 = vsel %vm402, %v401, 8
  %v411 = vsel %vm403, %v401, 8
  %v412 = vsel %vm404, %v401, 8
  %v413 = vsel %vm405, %v401, 8
  %v414 = vsel %vm406, %v401, 8
  %v415 = vsel %vm407, %v401, 8
  %v416 = vsel %vm408, %v401, 8
  %v417 = vsel %vm409, %v401, 8
  %v418 = vsel %vm375, %v410, 2147483647
  %v419 = vand.u32 %v418, 65535
  %v420 = vshra.s32 %v418, 16
  %v421 = vcvt.s32.f32 %v419
  %v422 = vcvt.s32.f32 %v420
  %423 = vmin.xlane.f32.xlu0 %v422
  %v424 = vpop.xlane.xlu0 %423
  %vm425 = vcmp.eq.f32.partialorder %v422, %v424
  %v426 = vsel %vm425, %v421, inf
  %427 = vmin.xlane.f32.xlu0 %v426
  %v428 = vpop.xlane.xlu0 %427
  %v429 = vcvt.f32.s32 %v428
  %v430 = vcvt.f32.s32 %v424
  %v431 = vshll.u32 %v430, 16
  %v432 = vadd.s32 %v431, %v429
  %v433 = vsel %vm375, %v411, 2147483647
  %v434 = vand.u32 %v433, 65535
  %v435 = vshra.s32 %v433, 16
  %v436 = vcvt.s32.f32 %v434
  %v437 = vcvt.s32.f32 %v435
  %438 = vmin.xlane.f32.xlu0 %v437
  %v439 = vpop.xlane.xlu0 %438
  %vm440 = vcmp.eq.f32.partialorder %v437, %v439
  %v441 = vsel %vm440, %v436, inf
  %442 = vmin.xlane.f32.xlu0 %v441
  %v443 = vpop.xlane.xlu0 %442
  %v444 = vcvt.f32.s32 %v443
  %v445 = vcvt.f32.s32 %v439
  %v446 = vshll.u32 %v445, 16
  %v447 = vadd.s32 %v446, %v444
  %v448 = vsel %vm375, %v412, 2147483647
  %v449 = vand.u32 %v448, 65535
  %v450 = vshra.s32 %v448, 16
  %v451 = vcvt.s32.f32 %v449
  %v452 = vcvt.s32.f32 %v450
  %453 = vmin.xlane.f32.xlu0 %v452
  %v454 = vpop.xlane.xlu0 %453
  %vm455 = vcmp.eq.f32.partialorder %v452, %v454
  %v456 = vsel %vm455, %v451, inf
  %457 = vmin.xlane.f32.xlu0 %v456
  %v458 = vpop.xlane.xlu0 %457
  %v459 = vcvt.f32.s32 %v458
  %v460 = vcvt.f32.s32 %v454
  %v461 = vshll.u32 %v460, 16
  %v462 = vadd.s32 %v461, %v459
  %v463 = vsel %vm375, %v413, 2147483647
  %v464 = vand.u32 %v463, 65535
  %v465 = vshra.s32 %v463, 16
  %v466 = vcvt.s32.f32 %v464
  %v467 = vcvt.s32.f32 %v465
  %468 = vmin.xlane.f32.xlu0 %v467
  %v469 = vpop.xlane.xlu0 %468
  %vm470 = vcmp.eq.f32.partialorder %v467, %v469
  %v471 = vsel %vm470, %v466, inf
  %472 = vmin.xlane.f32.xlu0 %v471
  %v473 = vpop.xlane.xlu0 %472
  %v474 = vcvt.f32.s32 %v473
  %v475 = vcvt.f32.s32 %v469
  %v476 = vshll.u32 %v475, 16
  %v477 = vadd.s32 %v476, %v474
  %v478 = vsel %vm375, %v414, 2147483647
  %v479 = vand.u32 %v478, 65535
  %v480 = vshra.s32 %v478, 16
  %v481 = vcvt.s32.f32 %v479
  %v482 = vcvt.s32.f32 %v480
  %483 = vmin.xlane.f32.xlu0 %v482
  %v484 = vpop.xlane.xlu0 %483
  %vm485 = vcmp.eq.f32.partialorder %v482, %v484
  %v486 = vsel %vm485, %v481, inf
  %487 = vmin.xlane.f32.xlu0 %v486
  %v488 = vpop.xlane.xlu0 %487
  %v489 = vcvt.f32.s32 %v488
  %v490 = vcvt.f32.s32 %v484
  %v491 = vshll.u32 %v490, 16
  %v492 = vadd.s32 %v491, %v489
  %v493 = vsel %vm375, %v415, 2147483647
  %v494 = vand.u32 %v493, 65535
  %v495 = vshra.s32 %v493, 16
  %v496 = vcvt.s32.f32 %v494
  %v497 = vcvt.s32.f32 %v495
  %498 = vmin.xlane.f32.xlu0 %v497
  %v499 = vpop.xlane.xlu0 %498
  %vm500 = vcmp.eq.f32.partialorder %v497, %v499
  %v501 = vsel %vm500, %v496, inf
  %502 = vmin.xlane.f32.xlu0 %v501
  %v503 = vpop.xlane.xlu0 %502
  %v504 = vcvt.f32.s32 %v503
  %v505 = vcvt.f32.s32 %v499
  %v506 = vshll.u32 %v505, 16
  %v507 = vadd.s32 %v506, %v504
  %v508 = vsel %vm375, %v416, 2147483647
  %v509 = vand.u32 %v508, 65535
  %v510 = vshra.s32 %v508, 16
  %v511 = vcvt.s32.f32 %v509
  %v512 = vcvt.s32.f32 %v510
  %513 = vmin.xlane.f32.xlu0 %v512
  %v514 = vpop.xlane.xlu0 %513
  %vm515 = vcmp.eq.f32.partialorder %v512, %v514
  %v516 = vsel %vm515, %v511, inf
  %517 = vmin.xlane.f32.xlu0 %v516
  %v518 = vpop.xlane.xlu0 %517
  %v519 = vcvt.f32.s32 %v518
  %v520 = vcvt.f32.s32 %v514
  %v521 = vshll.u32 %v520, 16
  %v522 = vadd.s32 %v521, %v519
  %v523 = vsel %vm375, %v417, 2147483647
  %v524 = vand.u32 %v523, 65535
  %v525 = vshra.s32 %v523, 16
  %v526 = vcvt.s32.f32 %v524
  %v527 = vcvt.s32.f32 %v525
  %528 = vmin.xlane.f32.xlu0 %v527
  %v529 = vpop.xlane.xlu0 %528
  %vm530 = vcmp.eq.f32.partialorder %v527, %v529
  %v531 = vsel %vm530, %v526, inf
  %532 = vmin.xlane.f32.xlu0 %v531
  %v533 = vpop.xlane.xlu0 %532
  %v534 = vcvt.f32.s32 %v533
  %v535 = vcvt.f32.s32 %v529
  %v536 = vshll.u32 %v535, 16
  %v537 = vadd.s32 %v536, %v534
  %v538 = vcvt.s32.f32 %v432
  %v539 = vcvt.s32.f32 %v447
  %v540 = vcvt.s32.f32 %v462
  %v541 = vcvt.s32.f32 %v477
  %v542 = vcvt.s32.f32 %v492
  %v543 = vcvt.s32.f32 %v507
  %v544 = vcvt.s32.f32 %v522
  %v545 = vcvt.s32.f32 %v537
  %vm546 = vcmp.eq.s32.totalorder %v401, 40
  %v547 = vsel %vm546, %v538, %v337
  %v548 = vsel %vm546, %v539, %v342
  %v549 = vsel %vm546, %v540, %v347
  %v550 = vsel %vm546, %v541, %v352
  %v551 = vsel %vm546, %v542, %v357
  %v552 = vsel %vm546, %v543, %v362
  %v553 = vsel %vm546, %v544, %v367
  %v554 = vsel %vm546, %v545, %v372
  %555 = vst [vmem:[%s4] sm:$0xff] %v547
  %556 = vst [vmem:[%s4 + $0x8] sm:$0xff] %v548
  %557 = vst [vmem:[%s4 + $0x10] sm:$0xff] %v549
  %558 = vst [vmem:[%s4 + $0x18] sm:$0xff] %v550
  %559 = vst [vmem:[%s4 + $0x20] sm:$0xff] %v551
  %560 = vst [vmem:[%s4 + $0x28] sm:$0xff] %v552
  %561 = vst [vmem:[%s4 + $0x30] sm:$0xff] %v553
  %562 = vst [vmem:[%s4 + $0x38] sm:$0xff] %v554
  // Predicated region
  $region18: #{skipe_rnn_forward.1} parent=0 // pred_check
    _
  $region19: #{skipe_rnn_forward.1} parent=0 // pred_check_branch
    %564 = sbr.rel (0) target = $region21
  $region20: #{skipe_rnn_forward.1} parent=0 // pred_region
    _
  $region21: #{skipe_rnn_forward.1} parent=0 // pred_fallthru
    _
  // Predicated region
  $region22: #{skipe_rnn_forward.1} parent=0 // pred_check
    _
  $region23: #{skipe_rnn_forward.1} parent=0 // pred_check_branch
    %566 = sbr.rel (0) target = $region25
  $region24: #{skipe_rnn_forward.1} parent=0 // pred_region
    _
  $region25: #{skipe_rnn_forward.1} parent=0 // pred_fallthru
    _

</llo_original>
